<compile_context>
chip_gen: v6e
topology: v6e:2x2x1
jax: 0.10.0
libtpu: 0.0.40
codegen_flags: <defaults>
</compile_context>

<pallas_src>
import functools

import jax
import jax.numpy as jnp
from jax import lax
from jax.experimental import pallas as pl
from jax.experimental.pallas import tpu as pltpu

VMEM_SPEC = pl.BlockSpec(memory_space=pltpu.MemorySpace.VMEM)
_CP = pltpu.CompilerParams(vmem_limit_bytes=64 * 1024 * 1024)


# --------------------------------------------------------------------------
# Kernel 1: fused (one-hot mean embedding) + layer-0 input projection.
#   out = (counts(idx)/L) @ (emb_table @ W_ih_stacked) + bias
# The composed table [Vpad, 8H] is precomputed once at init (bf16).
# Outputs are split into forward / backward halves so downstream BlockSpecs
# stay full-lane-width for any hidden size.
# --------------------------------------------------------------------------
def _onehot_proj_kernel(idx_ref, table_ref, bias_ref, outf_ref, outb_ref,
                        *, inv_l):
    idx = idx_ref[...]                                   # [N, L] int32
    N, L = idx.shape
    Vp = table_ref.shape[0]
    lane = lax.broadcasted_iota(jnp.int32, (N, Vp), 1)
    counts = jnp.zeros((N, Vp), jnp.float32)
    for l in range(L):                                   # static unroll (L small)
        counts = counts + (idx[:, l:l + 1] == lane).astype(jnp.float32)
    acc = jnp.dot((counts * inv_l).astype(jnp.bfloat16), table_ref[...],
                  preferred_element_type=jnp.float32)
    acc = acc + bias_ref[...]                            # [N, 8H] f32
    G = outf_ref.shape[1]                                # 4H
    outf_ref[...] = acc[:, :G]
    outb_ref[...] = acc[:, G:]


def onehot_proj(idx, table_bf16, bias, inv_l):
    N = idx.shape[0]
    P = table_bf16.shape[1]                              # 8H
    G = P // 2
    return pl.pallas_call(
        functools.partial(_onehot_proj_kernel, inv_l=inv_l),
        out_shape=(jax.ShapeDtypeStruct((N, G), jnp.float32),
                   jax.ShapeDtypeStruct((N, G), jnp.float32)),
        in_specs=[VMEM_SPEC] * 3,
        out_specs=(VMEM_SPEC, VMEM_SPEC),
        compiler_params=_CP,
    )(idx.astype(jnp.int32), table_bf16, bias)


# --------------------------------------------------------------------------
# Kernel 2: input projection for layers >= 1 (input = bidirectional output of
# the previous layer).  Concatenation is replaced by split weights:
#   xproj = out_f @ W_top + out_b @ W_bot + bias
# --------------------------------------------------------------------------
def _biproj_kernel(xf_ref, xb_ref, wtop_ref, wbot_ref, bias_ref,
                   outf_ref, outb_ref):
    xf = xf_ref[...].astype(jnp.bfloat16)
    xb = xb_ref[...].astype(jnp.bfloat16)
    acc = jnp.dot(xf, wtop_ref[...], preferred_element_type=jnp.float32)
    acc = acc + jnp.dot(xb, wbot_ref[...], preferred_element_type=jnp.float32)
    acc = acc + bias_ref[...]
    G = outf_ref.shape[1]
    outf_ref[...] = acc[:, :G]
    outb_ref[...] = acc[:, G:]


def biproj(xf2, xb2, wtop, wbot, bias):
    M = xf2.shape[0]
    P = wtop.shape[1]
    G = P // 2
    return pl.pallas_call(
        _biproj_kernel,
        out_shape=(jax.ShapeDtypeStruct((M, G), jnp.float32),
                   jax.ShapeDtypeStruct((M, G), jnp.float32)),
        in_specs=[VMEM_SPEC] * 5,
        out_specs=(VMEM_SPEC, VMEM_SPEC),
        compiler_params=_CP,
    )(xf2, xb2, wtop, wbot, bias)


# --------------------------------------------------------------------------
# Kernel 3: fused bidirectional LSTM recurrence, grid-pipelined over T.
# Inputs are already projected (x@W_ih + b); per step only h @ W_hh_blockdiag.
# PyTorch gate order (i, f, g, o).  h/c for both directions live in VMEM
# scratch carried across the sequential grid.
# --------------------------------------------------------------------------
def _bilstm_rec_kernel(xpf_ref, xpb_ref, whh_ref, outf_ref, outb_ref,
                       h_sc, c_sc):
    H = outf_ref.shape[2]

    @pl.when(pl.program_id(0) == 0)
    def _():
        h_sc[...] = jnp.zeros_like(h_sc)
        c_sc[...] = jnp.zeros_like(c_sc)

    # [B, 2H] @ [2H, 8H] block-diagonal -> forward gates | backward gates
    hh = jnp.dot(h_sc[...].astype(jnp.bfloat16), whh_ref[...],
                 preferred_element_type=jnp.float32)        # [B, 8H]
    gf = xpf_ref[0] + hh[:, :4 * H]                         # forward preact @ t
    gb = xpb_ref[0] + hh[:, 4 * H:]                         # backward preact @ T-1-t

    c_prev = c_sc[...]

    def cell(g, c):
        # NOTE: H-wide gate slices are sub-vreg at toy H; for real H (>=128)
        # they are vreg-aligned with this layout.
        i = jax.nn.sigmoid(g[:, 0 * H:1 * H])
        f = jax.nn.sigmoid(g[:, 1 * H:2 * H])
        gg = jnp.tanh(g[:, 2 * H:3 * H])
        o = jax.nn.sigmoid(g[:, 3 * H:4 * H])
        c_new = f * c + i * gg
        return o * jnp.tanh(c_new), c_new

    hf, cf = cell(gf, c_prev[:, :H])
    hb, cb = cell(gb, c_prev[:, H:])

    h_sc[...] = jnp.concatenate([hf, hb], axis=1)
    c_sc[...] = jnp.concatenate([cf, cb], axis=1)
    outf_ref[0] = hf
    outb_ref[0] = hb


def bilstm_rec(xpf, xpb, whh_blk, hidden):
    T, B, G = xpf.shape                                    # G = 4H
    H = hidden
    Tm1 = T - 1
    return pl.pallas_call(
        _bilstm_rec_kernel,
        out_shape=(jax.ShapeDtypeStruct((T, B, H), jnp.float32),
                   jax.ShapeDtypeStruct((T, B, H), jnp.float32)),
        grid_spec=pltpu.PrefetchScalarGridSpec(
            num_scalar_prefetch=0,
            grid=(T,),
            in_specs=[
                pl.BlockSpec((1, B, G), lambda t: (t, 0, 0)),
                pl.BlockSpec((1, B, G), lambda t: (Tm1 - t, 0, 0)),
                pl.BlockSpec(whh_blk.shape, lambda t: (0, 0)),   # resident
            ],
            out_specs=(
                pl.BlockSpec((1, B, H), lambda t: (t, 0, 0)),
                pl.BlockSpec((1, B, H), lambda t: (Tm1 - t, 0, 0)),
            ),
            scratch_shapes=[pltpu.VMEM((B, 2 * H), jnp.float32),
                            pltpu.VMEM((B, 2 * H), jnp.float32)],
        ),
        compiler_params=pltpu.CompilerParams(
            dimension_semantics=("arbitrary",),
            vmem_limit_bytes=64 * 1024 * 1024),
    )(xpf, xpb, whh_blk)


def bilstm_branch(branch, idx_rows, T, B, H, inv_l):
    """Stacked fused-direction BiLSTM; idx_rows is [T*B, L] time-major."""
    lyr0 = branch["layers"][0]
    xpf, xpb = onehot_proj(idx_rows, branch["proj_table0"], lyr0["b"], inv_l)
    outf, outb = bilstm_rec(xpf.reshape(T, B, 4 * H),
                            xpb.reshape(T, B, 4 * H), lyr0["whh"], H)
    for lyr in branch["layers"][1:]:
        xpf, xpb = biproj(outf.reshape(T * B, H), outb.reshape(T * B, H),
                          lyr["wih_top"], lyr["wih_bot"], lyr["b"])
        outf, outb = bilstm_rec(xpf.reshape(T, B, 4 * H),
                                xpb.reshape(T, B, 4 * H), lyr["whh"], H)
    return outf, outb


# --------------------------------------------------------------------------
# Kernel 4: the three linear heads (fc01, fc02, fc) fused; every concat is
# replaced by split weights.
# --------------------------------------------------------------------------
def _heads_kernel(f1_ref, f2_ref, f3_ref, f4_ref,
                  w01f_ref, w01b_ref, b01_ref,
                  w02f_ref, w02b_ref, b02_ref,
                  wf1_ref, wf2_ref, wf3_ref, wf4_ref, bf_ref,
                  final_ref, c1_ref, c2_ref):
    f1 = f1_ref[...].astype(jnp.bfloat16)     # emb-LSTM out[:, -1, :H]
    f2 = f2_ref[...].astype(jnp.bfloat16)     # emb-LSTM out[:, -1, H:]
    f3 = f3_ref[...].astype(jnp.bfloat16)     # len-LSTM forward final hidden
    f4 = f4_ref[...].astype(jnp.bfloat16)     # len-LSTM backward final hidden

    def mm(a, w_ref):
        return jnp.dot(a, w_ref[...], preferred_element_type=jnp.float32)

    c1_ref[...] = mm(f1, w01f_ref) + mm(f2, w01b_ref) + b01_ref[...]
    c2_ref[...] = mm(f3, w02f_ref) + mm(f4, w02b_ref) + b02_ref[...]
    final_ref[...] = (mm(f1, wf1_ref) + mm(f2, wf2_ref)
                      + mm(f3, wf3_ref) + mm(f4, wf4_ref) + bf_ref[...])


def heads(f1, f2, f3, f4, hp):
    B = f1.shape[0]
    C = hp["b01"].shape[1]
    return pl.pallas_call(
        _heads_kernel,
        out_shape=(jax.ShapeDtypeStruct((B, C), jnp.float32),
                   jax.ShapeDtypeStruct((B, C), jnp.float32),
                   jax.ShapeDtypeStruct((B, C), jnp.float32)),
        in_specs=[VMEM_SPEC] * 15,
        out_specs=(VMEM_SPEC, VMEM_SPEC, VMEM_SPEC),
        compiler_params=_CP,
    )(f1, f2, f3, f4,
      hp["w01f"], hp["w01b"], hp["b01"],
      hp["w02f"], hp["w02b"], hp["b02"],
      hp["wf1"], hp["wf2"], hp["wf3"], hp["wf4"], hp["b"])


# --------------------------------------------------------------------------
# Parameter init (deterministic, synthetic) with fused/bf16 layouts.
# --------------------------------------------------------------------------
def _randn(key, shape, scale=0.1):
    return jax.random.normal(key, shape, jnp.float32) * scale


def _pad_rows(x, rows):
    return jnp.pad(x, ((0, rows - x.shape[0]), (0, 0)))


def init_bilstm_branch(key, emb_table, input_size, hidden, num_layers):
    """emb_table [V, input_size] is composed into the layer-0 projection."""
    H = hidden
    layers = []
    proj_table0 = None
    for l in range(num_layers):
        din = input_size if l == 0 else 2 * H
        key, *sub = jax.random.split(key, 7)
        wih_f = _randn(sub[0], (din, 4 * H))
        whh_f = _randn(sub[1], (H, 4 * H))
        b_f = _randn(sub[2], (1, 4 * H))          # b_ih + b_hh combined
        wih_b = _randn(sub[3], (din, 4 * H))
        whh_b = _randn(sub[4], (H, 4 * H))
        b_b = _randn(sub[5], (1, 4 * H))

        wih = jnp.concatenate([wih_f, wih_b], axis=1)            # [din, 8H]
        b = jnp.concatenate([b_f, b_b], axis=1)                  # [1, 8H]
        whh = jnp.zeros((2 * H, 8 * H), jnp.float32)
        whh = whh.at[:H, :4 * H].set(whh_f).at[H:, 4 * H:].set(whh_b)
        entry = dict(b=b, whh=whh.astype(jnp.bfloat16))
        if l == 0:
            vp = max(128, ((emb_table.shape[0] + 127) // 128) * 128)
            proj_table0 = (_pad_rows(emb_table, vp) @ wih).astype(jnp.bfloat16)
        else:
            entry["wih_top"] = wih[:H].astype(jnp.bfloat16)
            entry["wih_bot"] = wih[H:].astype(jnp.bfloat16)
        layers.append(entry)
    return dict(proj_table0=proj_table0, layers=layers), key


def init_params(key, cfg):
    He, Hl, C = (cfg["emblstmhidden_size"], cfg["lenlstmhidden_size"],
                 cfg["num_classes"])
    key, k_emb, k_len = jax.random.split(key, 3)
    emb_table = _randn(k_emb, (cfg["n_vocab"], cfg["embedding_size"]))
    emb_table = emb_table.at[0].set(0.0)                  # padding_idx=0
    len_table = _randn(k_len, (cfg["length_emb_dim"], cfg["length_emb_size"]))
    len_table = len_table.at[0].set(0.0)                  # padding_idx=0

    emblstm, key = init_bilstm_branch(key, emb_table, cfg["embedding_size"],
                                      He, cfg["num_layers"])
    lenlstm, key = init_bilstm_branch(key, len_table, cfg["length_emb_size"],
                                      Hl, cfg["num_layers"])

    key, k1, k2, k3, k4, k5, k6 = jax.random.split(key, 7)
    w01 = _randn(k1, (2 * He, C))
    b01 = _randn(k2, (1, C))
    # NOTE: matches the reference fc02 shape; only consistent for num_layers==2.
    w02 = _randn(k3, (Hl * cfg["num_layers"], C))
    b02 = _randn(k4, (1, C))
    w = _randn(k5, ((He + Hl) * 2, C))
    b = _randn(k6, (1, C))
    head = dict(
        w01f=w01[:He].astype(jnp.bfloat16), w01b=w01[He:].astype(jnp.bfloat16),
        b01=b01,
        w02f=w02[:Hl].astype(jnp.bfloat16), w02b=w02[Hl:].astype(jnp.bfloat16),
        b02=b02,
        wf1=w[:He].astype(jnp.bfloat16),
        wf2=w[He:2 * He].astype(jnp.bfloat16),
        wf3=w[2 * He:2 * He + Hl].astype(jnp.bfloat16),
        wf4=w[2 * He + Hl:].astype(jnp.bfloat16),
        b=b,
    )
    return dict(emblstm=emblstm, lenlstm=lenlstm, head=head)


# --------------------------------------------------------------------------
# Full forward (feature='raw+length', embway='random', method='lstm').
# --------------------------------------------------------------------------
def pean_forward(params, traffic_bytes_idss, length_seq, cfg):
    B, pad_num, pad_len = traffic_bytes_idss.shape
    He = cfg["emblstmhidden_size"]
    Hl = cfg["lenlstmhidden_size"]
    Ts = cfg["pad_len_seq"]

    # --- raw branch: per-packet mean embedding fused into layer-0 projection ---
    idx_tm = jnp.transpose(traffic_bytes_idss, (1, 0, 2)).reshape(
        pad_num * B, pad_len).astype(jnp.int32)            # rows in (t, b) order
    outf_e, outb_e = bilstm_branch(params["emblstm"], idx_tm,
                                   pad_num, B, He, 1.0 / pad_len)
    of_e_last = outf_e[pad_num - 1]                         # output[:, -1, :He]
    ob_e_last = outb_e[pad_num - 1]                         # output[:, -1, He:]

    # --- length branch: plain embedding gather fused into layer-0 projection ---
    len_tm = jnp.transpose(length_seq, (1, 0)).reshape(Ts * B, 1).astype(jnp.int32)
    outf_l, outb_l = bilstm_branch(params["lenlstm"], len_tm, Ts, B, Hl, 1.0)
    hf_len = outf_l[Ts - 1]                                 # forward final hidden
    hb_len = outb_l[0]                                      # backward final hidden

    # --- heads ---
    final_output, out1_cls, out2_cls = heads(of_e_last, ob_e_last,
                                             hf_len, hb_len, params["head"])
    return final_output, out1_cls, out2_cls


if __name__ == "__main__":
    cfg = dict(
        n_vocab=64, embedding_size=32, pad_num=8, pad_len=16,
        emblstmhidden_size=32, num_layers=2,
        length_emb_dim=32, length_emb_size=16, pad_len_seq=8,
        lenlstmhidden_size=16, num_classes=4,
    )
    key = jax.random.PRNGKey(0)
    key, kp, kx, kl = jax.random.split(key, 4)
    params = init_params(kp, cfg)

    B = 2
    traffic_bytes_idss = jax.random.randint(
        kx, (B, cfg["pad_num"], cfg["pad_len"]), 0, cfg["n_vocab"], jnp.int32)
    length_seq = jax.random.randint(
        kl, (B, cfg["pad_len_seq"]), 0, cfg["length_emb_dim"], jnp.int32)

    final_output, out1_cls, out2_cls = pean_forward(
        params, traffic_bytes_idss, length_seq, cfg)
    jax.block_until_ready((final_output, out1_cls, out2_cls))

    assert final_output.shape == (B, cfg["num_classes"])
    assert out1_cls.shape == (B, cfg["num_classes"])
    assert out2_cls.shape == (B, cfg["num_classes"])
    print("KERNEL_OK")
</pallas_src>

<mosaic_0001>
module attributes {stable_mosaic.version = 11 : i64} {
  func.func @_onehot_proj_kernel(%arg0: memref<16x16xi32, #tpu.memory_space<vmem>>, %arg1: memref<128x256xbf16, #tpu.memory_space<vmem>>, %arg2: memref<1x256xf32, #tpu.memory_space<vmem>>, %arg3: memref<16x128xf32, #tpu.memory_space<vmem>>, %arg4: memref<16x128xf32, #tpu.memory_space<vmem>>) attributes {dimension_semantics = [], scalar_prefetch = 0 : i64, scratch_operands = 0 : i64, tpu.core_type = #tpu.core_type<tc>} {
    %c0 = arith.constant 0 : index
    %c0_0 = arith.constant 0 : index
    %0 = vector.load %arg0[%c0, %c0_0] : memref<16x16xi32, #tpu.memory_space<vmem>>, vector<16x16xi32>
    %1 = tpu.iota {dimensions = array<i32: 1>} : vector<16x128xi32>
    %cst = arith.constant 0.000000e+00 : f32
    %2 = vector.broadcast %cst : f32 to vector<16x128xf32>
    %3 = vector.extract_strided_slice %0 {offsets = [0, 0], sizes = [16, 1], strides = [1, 1]} : vector<16x16xi32> to vector<16x1xi32>
    %4 = vector.broadcast %3 : vector<16x1xi32> to vector<16x128xi32>
    %5 = arith.cmpi eq, %4, %1 : vector<16x128xi32>
    %6 = arith.extui %5 : vector<16x128xi1> to vector<16x128xi32>
    %7 = arith.sitofp %6 : vector<16x128xi32> to vector<16x128xf32>
    %8 = arith.addf %2, %7 : vector<16x128xf32>
    %9 = vector.extract_strided_slice %0 {offsets = [0, 1], sizes = [16, 1], strides = [1, 1]} : vector<16x16xi32> to vector<16x1xi32>
    %10 = vector.broadcast %9 : vector<16x1xi32> to vector<16x128xi32>
    %11 = arith.cmpi eq, %10, %1 : vector<16x128xi32>
    %12 = arith.extui %11 : vector<16x128xi1> to vector<16x128xi32>
    %13 = arith.sitofp %12 : vector<16x128xi32> to vector<16x128xf32>
    %14 = arith.addf %8, %13 : vector<16x128xf32>
    %15 = vector.extract_strided_slice %0 {offsets = [0, 2], sizes = [16, 1], strides = [1, 1]} : vector<16x16xi32> to vector<16x1xi32>
    %16 = vector.broadcast %15 : vector<16x1xi32> to vector<16x128xi32>
    %17 = arith.cmpi eq, %16, %1 : vector<16x128xi32>
    %18 = arith.extui %17 : vector<16x128xi1> to vector<16x128xi32>
    %19 = arith.sitofp %18 : vector<16x128xi32> to vector<16x128xf32>
    %20 = arith.addf %14, %19 : vector<16x128xf32>
    %21 = vector.extract_strided_slice %0 {offsets = [0, 3], sizes = [16, 1], strides = [1, 1]} : vector<16x16xi32> to vector<16x1xi32>
    %22 = vector.broadcast %21 : vector<16x1xi32> to vector<16x128xi32>
    %23 = arith.cmpi eq, %22, %1 : vector<16x128xi32>
    %24 = arith.extui %23 : vector<16x128xi1> to vector<16x128xi32>
    %25 = arith.sitofp %24 : vector<16x128xi32> to vector<16x128xf32>
    %26 = arith.addf %20, %25 : vector<16x128xf32>
    %27 = vector.extract_strided_slice %0 {offsets = [0, 4], sizes = [16, 1], strides = [1, 1]} : vector<16x16xi32> to vector<16x1xi32>
    %28 = vector.broadcast %27 : vector<16x1xi32> to vector<16x128xi32>
    %29 = arith.cmpi eq, %28, %1 : vector<16x128xi32>
    %30 = arith.extui %29 : vector<16x128xi1> to vector<16x128xi32>
    %31 = arith.sitofp %30 : vector<16x128xi32> to vector<16x128xf32>
    %32 = arith.addf %26, %31 : vector<16x128xf32>
    %33 = vector.extract_strided_slice %0 {offsets = [0, 5], sizes = [16, 1], strides = [1, 1]} : vector<16x16xi32> to vector<16x1xi32>
    %34 = vector.broadcast %33 : vector<16x1xi32> to vector<16x128xi32>
    %35 = arith.cmpi eq, %34, %1 : vector<16x128xi32>
    %36 = arith.extui %35 : vector<16x128xi1> to vector<16x128xi32>
    %37 = arith.sitofp %36 : vector<16x128xi32> to vector<16x128xf32>
    %38 = arith.addf %32, %37 : vector<16x128xf32>
    %39 = vector.extract_strided_slice %0 {offsets = [0, 6], sizes = [16, 1], strides = [1, 1]} : vector<16x16xi32> to vector<16x1xi32>
    %40 = vector.broadcast %39 : vector<16x1xi32> to vector<16x128xi32>
    %41 = arith.cmpi eq, %40, %1 : vector<16x128xi32>
    %42 = arith.extui %41 : vector<16x128xi1> to vector<16x128xi32>
    %43 = arith.sitofp %42 : vector<16x128xi32> to vector<16x128xf32>
    %44 = arith.addf %38, %43 : vector<16x128xf32>
    %45 = vector.extract_strided_slice %0 {offsets = [0, 7], sizes = [16, 1], strides = [1, 1]} : vector<16x16xi32> to vector<16x1xi32>
    %46 = vector.broadcast %45 : vector<16x1xi32> to vector<16x128xi32>
    %47 = arith.cmpi eq, %46, %1 : vector<16x128xi32>
    %48 = arith.extui %47 : vector<16x128xi1> to vector<16x128xi32>
    %49 = arith.sitofp %48 : vector<16x128xi32> to vector<16x128xf32>
    %50 = arith.addf %44, %49 : vector<16x128xf32>
    %51 = vector.extract_strided_slice %0 {offsets = [0, 8], sizes = [16, 1], strides = [1, 1]} : vector<16x16xi32> to vector<16x1xi32>
    %52 = vector.broadcast %51 : vector<16x1xi32> to vector<16x128xi32>
    %53 = arith.cmpi eq, %52, %1 : vector<16x128xi32>
    %54 = arith.extui %53 : vector<16x128xi1> to vector<16x128xi32>
    %55 = arith.sitofp %54 : vector<16x128xi32> to vector<16x128xf32>
    %56 = arith.addf %50, %55 : vector<16x128xf32>
    %57 = vector.extract_strided_slice %0 {offsets = [0, 9], sizes = [16, 1], strides = [1, 1]} : vector<16x16xi32> to vector<16x1xi32>
    %58 = vector.broadcast %57 : vector<16x1xi32> to vector<16x128xi32>
    %59 = arith.cmpi eq, %58, %1 : vector<16x128xi32>
    %60 = arith.extui %59 : vector<16x128xi1> to vector<16x128xi32>
    %61 = arith.sitofp %60 : vector<16x128xi32> to vector<16x128xf32>
    %62 = arith.addf %56, %61 : vector<16x128xf32>
    %63 = vector.extract_strided_slice %0 {offsets = [0, 10], sizes = [16, 1], strides = [1, 1]} : vector<16x16xi32> to vector<16x1xi32>
    %64 = vector.broadcast %63 : vector<16x1xi32> to vector<16x128xi32>
    %65 = arith.cmpi eq, %64, %1 : vector<16x128xi32>
    %66 = arith.extui %65 : vector<16x128xi1> to vector<16x128xi32>
    %67 = arith.sitofp %66 : vector<16x128xi32> to vector<16x128xf32>
    %68 = arith.addf %62, %67 : vector<16x128xf32>
    %69 = vector.extract_strided_slice %0 {offsets = [0, 11], sizes = [16, 1], strides = [1, 1]} : vector<16x16xi32> to vector<16x1xi32>
    %70 = vector.broadcast %69 : vector<16x1xi32> to vector<16x128xi32>
    %71 = arith.cmpi eq, %70, %1 : vector<16x128xi32>
    %72 = arith.extui %71 : vector<16x128xi1> to vector<16x128xi32>
    %73 = arith.sitofp %72 : vector<16x128xi32> to vector<16x128xf32>
    %74 = arith.addf %68, %73 : vector<16x128xf32>
    %75 = vector.extract_strided_slice %0 {offsets = [0, 12], sizes = [16, 1], strides = [1, 1]} : vector<16x16xi32> to vector<16x1xi32>
    %76 = vector.broadcast %75 : vector<16x1xi32> to vector<16x128xi32>
    %77 = arith.cmpi eq, %76, %1 : vector<16x128xi32>
    %78 = arith.extui %77 : vector<16x128xi1> to vector<16x128xi32>
    %79 = arith.sitofp %78 : vector<16x128xi32> to vector<16x128xf32>
    %80 = arith.addf %74, %79 : vector<16x128xf32>
    %81 = vector.extract_strided_slice %0 {offsets = [0, 13], sizes = [16, 1], strides = [1, 1]} : vector<16x16xi32> to vector<16x1xi32>
    %82 = vector.broadcast %81 : vector<16x1xi32> to vector<16x128xi32>
    %83 = arith.cmpi eq, %82, %1 : vector<16x128xi32>
    %84 = arith.extui %83 : vector<16x128xi1> to vector<16x128xi32>
    %85 = arith.sitofp %84 : vector<16x128xi32> to vector<16x128xf32>
    %86 = arith.addf %80, %85 : vector<16x128xf32>
    %87 = vector.extract_strided_slice %0 {offsets = [0, 14], sizes = [16, 1], strides = [1, 1]} : vector<16x16xi32> to vector<16x1xi32>
    %88 = vector.broadcast %87 : vector<16x1xi32> to vector<16x128xi32>
    %89 = arith.cmpi eq, %88, %1 : vector<16x128xi32>
    %90 = arith.extui %89 : vector<16x128xi1> to vector<16x128xi32>
    %91 = arith.sitofp %90 : vector<16x128xi32> to vector<16x128xf32>
    %92 = arith.addf %86, %91 : vector<16x128xf32>
    %93 = vector.extract_strided_slice %0 {offsets = [0, 15], sizes = [16, 1], strides = [1, 1]} : vector<16x16xi32> to vector<16x1xi32>
    %94 = vector.broadcast %93 : vector<16x1xi32> to vector<16x128xi32>
    %95 = arith.cmpi eq, %94, %1 : vector<16x128xi32>
    %96 = arith.extui %95 : vector<16x128xi1> to vector<16x128xi32>
    %97 = arith.sitofp %96 : vector<16x128xi32> to vector<16x128xf32>
    %98 = arith.addf %92, %97 : vector<16x128xf32>
    %cst_1 = arith.constant 6.250000e-02 : f32
    %99 = vector.broadcast %cst_1 : f32 to vector<16x128xf32>
    %100 = arith.mulf %98, %99 : vector<16x128xf32>
    %101 = arith.truncf %100 : vector<16x128xf32> to vector<16x128xbf16>
    %c0_2 = arith.constant 0 : index
    %c0_3 = arith.constant 0 : index
    %102 = vector.load %arg1[%c0_2, %c0_3] : memref<128x256xbf16, #tpu.memory_space<vmem>>, vector<128x256xbf16>
    %cst_4 = arith.constant dense<0.000000e+00> : vector<16x256xf32>
    %103 = tpu.matmul %101, %102, %cst_4 {dimension_numbers = #tpu.dot_dimension_numbers<[1], [0], [0], [1], [0, 0, 1, 1], [], []>} : vector<16x128xbf16>, vector<128x256xbf16>, vector<16x256xf32> -> vector<16x256xf32>
    %c0_5 = arith.constant 0 : index
    %c0_6 = arith.constant 0 : index
    %104 = vector.load %arg2[%c0_5, %c0_6] : memref<1x256xf32, #tpu.memory_space<vmem>>, vector<1x256xf32>
    %105 = vector.broadcast %104 : vector<1x256xf32> to vector<16x256xf32>
    %106 = arith.addf %103, %105 : vector<16x256xf32>
    %107 = vector.extract_strided_slice %106 {offsets = [0, 0], sizes = [16, 128], strides = [1, 1]} : vector<16x256xf32> to vector<16x128xf32>
    %c0_7 = arith.constant 0 : index
    %c0_8 = arith.constant 0 : index
    %108 = vector.load %arg3[%c0_7, %c0_8] : memref<16x128xf32, #tpu.memory_space<vmem>>, vector<16x128xf32>
    tpu.vector_store %arg3[%c0_7, %c0_8], %107 {strides = array<i32>} : memref<16x128xf32, #tpu.memory_space<vmem>>, vector<16x128xf32>,
    %109 = vector.extract_strided_slice %106 {offsets = [0, 128], sizes = [16, 128], strides = [1, 1]} : vector<16x256xf32> to vector<16x128xf32>
    %c0_9 = arith.constant 0 : index
    %c0_10 = arith.constant 0 : index
    %110 = vector.load %arg4[%c0_9, %c0_10] : memref<16x128xf32, #tpu.memory_space<vmem>>, vector<16x128xf32>
    tpu.vector_store %arg4[%c0_9, %c0_10], %109 {strides = array<i32>} : memref<16x128xf32, #tpu.memory_space<vmem>>, vector<16x128xf32>,
    return
  }
}

</mosaic_0001>

<llo_original>
// kernel: tpu_custom_call.1
$region0: #{tpu_custom_call.1}
  #allocation0 [shape = 'u32[]', space=smem, size = 0x4, offset = 0x4, fixed_abs, tag = 'smem constant byte address 0x4 - core index']
  #allocation1 [shape = 'u32[144,128]{1,0:T(1,128)}', space=vmem, size = 0x12000, scoped, tag = 'internal scratch']
  %s0 = inlined_call_operand.hbm [shape: s32[16,16], index: 0, kind: input, shape index: {}]
  %s1 = inlined_call_operand.hbm [shape: bf16[128,256], index: 1, kind: input, shape index: {}]
  %s2 = inlined_call_operand.vmem [shape: f32[1,256], index: 2, kind: input, shape index: {}]
  %s3 = inlined_call_operand.hbm [shape: f32[16,128], index: 3, kind: output, shape index: {0}]
  %s4 = inlined_call_operand.hbm [shape: f32[16,128], index: 4, kind: output, shape index: {1}]
  %5 = xla_tuple %s3, %s4
  %s6 = sld [smem:[#allocation0]]
  $region38: #{tpu_custom_call.1} parent=0
    _
  %s8 = ssub.s32 1, %s6
  %s9 = scalar_select 0, %s8, %s6
  $region1: #{tpu_custom_call.1} parent=0
    #allocation2 [shape = 'u8[8192]{0}', space=vmem, size = 0x2000, scoped, tag = 'input window, operand 0, single buffered']
    #allocation3 [shape = 's32[1]{0}', space=sflag, size = 0x4, scoped, tag = 'scoped memory for tpu_custom_call.1']
    #allocation4 [shape = 's32[1]{0}', space=sflag, size = 0x4, scoped, tag = 'scoped memory for tpu_custom_call.1']
    #allocation5 [shape = 'u8[65536]{0}', space=vmem, size = 0x10000, scoped, tag = 'input window, operand 1, single buffered']
    #allocation6 [shape = 's32[1]{0}', space=sflag, size = 0x4, scoped, tag = 'scoped memory for tpu_custom_call.1']
    #allocation7 [shape = 'u8[8192]{0}', space=vmem, size = 0x2000, scoped, tag = 'output window, operand 0, single buffered']
    #allocation8 [shape = 'u8[8192]{0}', space=vmem, size = 0x2000, scoped, tag = 'output window, operand 1, single buffered']
    #allocation9 [shape = 's32[1]{0}', space=sflag, size = 0x4, scoped, tag = 'scoped memory for tpu_custom_call.1']
    %10 = vsyncpa [#allocation3], 0
    %11 = vsyncpa [#allocation6], 0
    %12 = vsyncpa [#allocation4], 0
    %13 = vsyncpa [#allocation9], 0
    // Predicated region
    $region2: #{tpu_custom_call.1} parent=1 // pred_check
      _
    $region3: #{tpu_custom_call.1} parent=1 // pred_check_branch
      %15 = sbr.rel (0) target = $region5
    $region4: #{tpu_custom_call.1} parent=1 // pred_region
      %s17 = ssub.s32 256, 256
      %18 = vsyncadd [#allocation3], %s17
      %s19 = sshll.u32 [#allocation2], 4
      %s20 = int_to_ptr.vmem [resolvable:$true] %s19
      %25 = dma.hbm_to_vmem [thread:$0]  %s0, 256, %s20, [#allocation3], 128, 128, 8
    $region5: #{tpu_custom_call.1} parent=1 // pred_fallthru
      _
    // Predicated region
    $region6: #{tpu_custom_call.1} parent=1 // pred_check
      _
    $region7: #{tpu_custom_call.1} parent=1 // pred_check_branch
      %27 = sbr.rel (0) target = $region9
    $region8: #{tpu_custom_call.1} parent=1 // pred_region
      %s29 = ssub.s32 2048, 2048
      %30 = vsyncadd [#allocation6], %s29
      %s31 = sshll.u32 [#allocation5], 4
      %s32 = int_to_ptr.vmem [resolvable:$true] %s31
      %37 = dma.hbm_to_vmem [thread:$0]  %s1, 2048, %s32, [#allocation6], 128, 128, 8
    $region9: #{tpu_custom_call.1} parent=1 // pred_fallthru
      _
    // Predicated region
    $region10: #{tpu_custom_call.1} parent=1 // pred_check
      _
    $region11: #{tpu_custom_call.1} parent=1 // pred_check_branch
      %39 = sbr.rel (0) target = $region13
    $region12: #{tpu_custom_call.1} parent=1 // pred_region
      _
    $region13: #{tpu_custom_call.1} parent=1 // pred_fallthru
      _
    // Predicated region
    $region14: #{tpu_custom_call.1} parent=1 // pred_check
      _
    $region15: #{tpu_custom_call.1} parent=1 // pred_check_branch
      %41 = sbr.rel (0) target = $region17
    $region16: #{tpu_custom_call.1} parent=1 // pred_region
      %42 = dma.done [#allocation3], 256
    $region17: #{tpu_custom_call.1} parent=1 // pred_fallthru
      _
    // Predicated region
    $region18: #{tpu_custom_call.1} parent=1 // pred_check
      _
    $region19: #{tpu_custom_call.1} parent=1 // pred_check_branch
      %44 = sbr.rel (0) target = $region21
    $region20: #{tpu_custom_call.1} parent=1 // pred_region
      %45 = dma.done [#allocation6], 2048
    $region21: #{tpu_custom_call.1} parent=1 // pred_fallthru
      _
    %v47 = vld [vmem:[#allocation2] sm:$0xff]
    %v48 = vld [vmem:[#allocation2 + $0x8] sm:$0xff]
    %v49 = vlaneseq
    %v50 = vand.u32 %v49, 127
    %51 = vset.pattern.permute.xlu0 0
    %52 = vperm.xlu0 %51, %v47
    %v53 = vpop.permute.xlu0 %52
    %54 = vset.pattern.permute.xlu0 0
    %55 = vperm.xlu0 %54, %v48
    %v56 = vpop.permute.xlu0 %55
    %vm57 = vcmp.eq.s32.totalorder %v53, %v50
    %vm58 = vcmp.eq.s32.totalorder %v56, %v50
    %v59 = vsel %vm57, 1, 0
    %v60 = vsel %vm58, 1, 0
    %v61 = vcvt.s32.f32 %v59
    %v62 = vcvt.s32.f32 %v60
    %v63 = vadd.f32 %v61, 0.0
    %v64 = vadd.f32 %v62, 0.0
    %65 = vset.pattern.permute.xlu0 1
    %66 = vperm.xlu0 %65, %v47
    %v67 = vpop.permute.xlu0 %66
    %68 = vset.pattern.permute.xlu0 1
    %69 = vperm.xlu0 %68, %v48
    %v70 = vpop.permute.xlu0 %69
    %vm71 = vcmp.eq.s32.totalorder %v67, %v50
    %vm72 = vcmp.eq.s32.totalorder %v70, %v50
    %v73 = vsel %vm71, 1, 0
    %v74 = vsel %vm72, 1, 0
    %v75 = vcvt.s32.f32 %v73
    %v76 = vcvt.s32.f32 %v74
    %v77 = vadd.f32 %v63, %v75
    %v78 = vadd.f32 %v64, %v76
    %79 = vset.pattern.permute.xlu0 2
    %80 = vperm.xlu0 %79, %v47
    %v81 = vpop.permute.xlu0 %80
    %82 = vset.pattern.permute.xlu0 2
    %83 = vperm.xlu0 %82, %v48
    %v84 = vpop.permute.xlu0 %83
    %vm85 = vcmp.eq.s32.totalorder %v81, %v50
    %vm86 = vcmp.eq.s32.totalorder %v84, %v50
    %v87 = vsel %vm85, 1, 0
    %v88 = vsel %vm86, 1, 0
    %v89 = vcvt.s32.f32 %v87
    %v90 = vcvt.s32.f32 %v88
    %v91 = vadd.f32 %v77, %v89
    %v92 = vadd.f32 %v78, %v90
    %93 = vset.pattern.permute.xlu0 3
    %94 = vperm.xlu0 %93, %v47
    %v95 = vpop.permute.xlu0 %94
    %96 = vset.pattern.permute.xlu0 3
    %97 = vperm.xlu0 %96, %v48
    %v98 = vpop.permute.xlu0 %97
    %vm99 = vcmp.eq.s32.totalorder %v95, %v50
    %vm100 = vcmp.eq.s32.totalorder %v98, %v50
    %v101 = vsel %vm99, 1, 0
    %v102 = vsel %vm100, 1, 0
    %v103 = vcvt.s32.f32 %v101
    %v104 = vcvt.s32.f32 %v102
    %v105 = vadd.f32 %v91, %v103
    %v106 = vadd.f32 %v92, %v104
    %107 = vset.pattern.permute.xlu0 4
    %108 = vperm.xlu0 %107, %v47
    %v109 = vpop.permute.xlu0 %108
    %110 = vset.pattern.permute.xlu0 4
    %111 = vperm.xlu0 %110, %v48
    %v112 = vpop.permute.xlu0 %111
    %vm113 = vcmp.eq.s32.totalorder %v109, %v50
    %vm114 = vcmp.eq.s32.totalorder %v112, %v50
    %v115 = vsel %vm113, 1, 0
    %v116 = vsel %vm114, 1, 0
    %v117 = vcvt.s32.f32 %v115
    %v118 = vcvt.s32.f32 %v116
    %v119 = vadd.f32 %v105, %v117
    %v120 = vadd.f32 %v106, %v118
    %121 = vset.pattern.permute.xlu0 5
    %122 = vperm.xlu0 %121, %v47
    %v123 = vpop.permute.xlu0 %122
    %124 = vset.pattern.permute.xlu0 5
    %125 = vperm.xlu0 %124, %v48
    %v126 = vpop.permute.xlu0 %125
    %vm127 = vcmp.eq.s32.totalorder %v123, %v50
    %vm128 = vcmp.eq.s32.totalorder %v126, %v50
    %v129 = vsel %vm127, 1, 0
    %v130 = vsel %vm128, 1, 0
    %v131 = vcvt.s32.f32 %v129
    %v132 = vcvt.s32.f32 %v130
    %v133 = vadd.f32 %v119, %v131
    %v134 = vadd.f32 %v120, %v132
    %135 = vset.pattern.permute.xlu0 6
    %136 = vperm.xlu0 %135, %v47
    %v137 = vpop.permute.xlu0 %136
    %138 = vset.pattern.permute.xlu0 6
    %139 = vperm.xlu0 %138, %v48
    %v140 = vpop.permute.xlu0 %139
    %vm141 = vcmp.eq.s32.totalorder %v137, %v50
    %vm142 = vcmp.eq.s32.totalorder %v140, %v50
    %v143 = vsel %vm141, 1, 0
    %v144 = vsel %vm142, 1, 0
    %v145 = vcvt.s32.f32 %v143
    %v146 = vcvt.s32.f32 %v144
    %v147 = vadd.f32 %v133, %v145
    %v148 = vadd.f32 %v134, %v146
    %149 = vset.pattern.permute.xlu0 7
    %150 = vperm.xlu0 %149, %v47
    %v151 = vpop.permute.xlu0 %150
    %152 = vset.pattern.permute.xlu0 7
    %153 = vperm.xlu0 %152, %v48
    %v154 = vpop.permute.xlu0 %153
    %vm155 = vcmp.eq.s32.totalorder %v151, %v50
    %vm156 = vcmp.eq.s32.totalorder %v154, %v50
    %v157 = vsel %vm155, 1, 0
    %v158 = vsel %vm156, 1, 0
    %v159 = vcvt.s32.f32 %v157
    %v160 = vcvt.s32.f32 %v158
    %v161 = vadd.f32 %v147, %v159
    %v162 = vadd.f32 %v148, %v160
    %163 = vset.pattern.permute.xlu0 8
    %164 = vperm.xlu0 %163, %v47
    %v165 = vpop.permute.xlu0 %164
    %166 = vset.pattern.permute.xlu0 8
    %167 = vperm.xlu0 %166, %v48
    %v168 = vpop.permute.xlu0 %167
    %vm169 = vcmp.eq.s32.totalorder %v165, %v50
    %vm170 = vcmp.eq.s32.totalorder %v168, %v50
    %v171 = vsel %vm169, 1, 0
    %v172 = vsel %vm170, 1, 0
    %v173 = vcvt.s32.f32 %v171
    %v174 = vcvt.s32.f32 %v172
    %v175 = vadd.f32 %v161, %v173
    %v176 = vadd.f32 %v162, %v174
    %177 = vset.pattern.permute.xlu0 9
    %178 = vperm.xlu0 %177, %v47
    %v179 = vpop.permute.xlu0 %178
    %180 = vset.pattern.permute.xlu0 9
    %181 = vperm.xlu0 %180, %v48
    %v182 = vpop.permute.xlu0 %181
    %vm183 = vcmp.eq.s32.totalorder %v179, %v50
    %vm184 = vcmp.eq.s32.totalorder %v182, %v50
    %v185 = vsel %vm183, 1, 0
    %v186 = vsel %vm184, 1, 0
    %v187 = vcvt.s32.f32 %v185
    %v188 = vcvt.s32.f32 %v186
    %v189 = vadd.f32 %v175, %v187
    %v190 = vadd.f32 %v176, %v188
    %191 = vset.pattern.permute.xlu0 10
    %192 = vperm.xlu0 %191, %v47
    %v193 = vpop.permute.xlu0 %192
    %194 = vset.pattern.permute.xlu0 10
    %195 = vperm.xlu0 %194, %v48
    %v196 = vpop.permute.xlu0 %195
    %vm197 = vcmp.eq.s32.totalorder %v193, %v50
    %vm198 = vcmp.eq.s32.totalorder %v196, %v50
    %v199 = vsel %vm197, 1, 0
    %v200 = vsel %vm198, 1, 0
    %v201 = vcvt.s32.f32 %v199
    %v202 = vcvt.s32.f32 %v200
    %v203 = vadd.f32 %v189, %v201
    %v204 = vadd.f32 %v190, %v202
    %205 = vset.pattern.permute.xlu0 11
    %206 = vperm.xlu0 %205, %v47
    %v207 = vpop.permute.xlu0 %206
    %208 = vset.pattern.permute.xlu0 11
    %209 = vperm.xlu0 %208, %v48
    %v210 = vpop.permute.xlu0 %209
    %vm211 = vcmp.eq.s32.totalorder %v207, %v50
    %vm212 = vcmp.eq.s32.totalorder %v210, %v50
    %v213 = vsel %vm211, 1, 0
    %v214 = vsel %vm212, 1, 0
    %v215 = vcvt.s32.f32 %v213
    %v216 = vcvt.s32.f32 %v214
    %v217 = vadd.f32 %v203, %v215
    %v218 = vadd.f32 %v204, %v216
    %219 = vset.pattern.permute.xlu0 12
    %220 = vperm.xlu0 %219, %v47
    %v221 = vpop.permute.xlu0 %220
    %222 = vset.pattern.permute.xlu0 12
    %223 = vperm.xlu0 %222, %v48
    %v224 = vpop.permute.xlu0 %223
    %vm225 = vcmp.eq.s32.totalorder %v221, %v50
    %vm226 = vcmp.eq.s32.totalorder %v224, %v50
    %v227 = vsel %vm225, 1, 0
    %v228 = vsel %vm226, 1, 0
    %v229 = vcvt.s32.f32 %v227
    %v230 = vcvt.s32.f32 %v228
    %v231 = vadd.f32 %v217, %v229
    %v232 = vadd.f32 %v218, %v230
    %233 = vset.pattern.permute.xlu0 13
    %234 = vperm.xlu0 %233, %v47
    %v235 = vpop.permute.xlu0 %234
    %236 = vset.pattern.permute.xlu0 13
    %237 = vperm.xlu0 %236, %v48
    %v238 = vpop.permute.xlu0 %237
    %vm239 = vcmp.eq.s32.totalorder %v235, %v50
    %vm240 = vcmp.eq.s32.totalorder %v238, %v50
    %v241 = vsel %vm239, 1, 0
    %v242 = vsel %vm240, 1, 0
    %v243 = vcvt.s32.f32 %v241
    %v244 = vcvt.s32.f32 %v242
    %v245 = vadd.f32 %v231, %v243
    %v246 = vadd.f32 %v232, %v244
    %247 = vset.pattern.permute.xlu0 14
    %248 = vperm.xlu0 %247, %v47
    %v249 = vpop.permute.xlu0 %248
    %250 = vset.pattern.permute.xlu0 14
    %251 = vperm.xlu0 %250, %v48
    %v252 = vpop.permute.xlu0 %251
    %vm253 = vcmp.eq.s32.totalorder %v249, %v50
    %vm254 = vcmp.eq.s32.totalorder %v252, %v50
    %v255 = vsel %vm253, 1, 0
    %v256 = vsel %vm254, 1, 0
    %v257 = vcvt.s32.f32 %v255
    %v258 = vcvt.s32.f32 %v256
    %v259 = vadd.f32 %v245, %v257
    %v260 = vadd.f32 %v246, %v258
    %261 = vset.pattern.permute.xlu0 15
    %262 = vperm.xlu0 %261, %v47
    %v263 = vpop.permute.xlu0 %262
    %264 = vset.pattern.permute.xlu0 15
    %265 = vperm.xlu0 %264, %v48
    %v266 = vpop.permute.xlu0 %265
    %vm267 = vcmp.eq.s32.totalorder %v263, %v50
    %vm268 = vcmp.eq.s32.totalorder %v266, %v50
    %v269 = vsel %vm267, 1, 0
    %v270 = vsel %vm268, 1, 0
    %v271 = vcvt.s32.f32 %v269
    %v272 = vcvt.s32.f32 %v270
    %v273 = vadd.f32 %v259, %v271
    %v274 = vadd.f32 %v260, %v272
    %v275 = vmul.f32 %v273, 0.0625
    %v276 = vmul.f32 %v274, 0.0625
    %v277 = vpack.c.bf16 %v276, %v275
    %v278 = vld [vmem:[#allocation5] sm:$0xff]
    %v279 = vld [vmem:[#allocation5 + $0x8] sm:$0xff]
    %v280 = vld [vmem:[#allocation5 + $0x10] sm:$0xff]
    %v281 = vld [vmem:[#allocation5 + $0x18] sm:$0xff]
    %v282 = vld [vmem:[#allocation5 + $0x20] sm:$0xff]
    %v283 = vld [vmem:[#allocation5 + $0x28] sm:$0xff]
    %v284 = vld [vmem:[#allocation5 + $0x30] sm:$0xff]
    %v285 = vld [vmem:[#allocation5 + $0x38] sm:$0xff]
    %v286 = vld [vmem:[#allocation5 + $0x40] sm:$0xff]
    %v287 = vld [vmem:[#allocation5 + $0x48] sm:$0xff]
    %v288 = vld [vmem:[#allocation5 + $0x50] sm:$0xff]
    %v289 = vld [vmem:[#allocation5 + $0x58] sm:$0xff]
    %v290 = vld [vmem:[#allocation5 + $0x60] sm:$0xff]
    %v291 = vld [vmem:[#allocation5 + $0x68] sm:$0xff]
    %v292 = vld [vmem:[#allocation5 + $0x70] sm:$0xff]
    %v293 = vld [vmem:[#allocation5 + $0x78] sm:$0xff]
    %v294 = vld [vmem:[%s2] sm:$0x3]
    %v296 = vlaneseq
    %v297 = vshrl.u32 %v296, 7
    %v298 = vsub.s32 0, %v297
    %v299 = vrot.slane %v294, %v298
    %v300 = vlaneseq
    %v301 = vshrl.u32 %v300, 7
    %v302 = vsub.s32 1, %v301
    %v303 = vrot.slane %v294, %v302
    %v322 = vunpack.c.l.b16 %v278
    %v323 = vunpack.c.h.b16 %v278
    %v324 = vunpack.c.l.b16 %v279
    %v325 = vunpack.c.h.b16 %v279
    %v326 = vunpack.c.l.b16 %v280
    %v327 = vunpack.c.h.b16 %v280
    %v328 = vunpack.c.l.b16 %v281
    %v329 = vunpack.c.h.b16 %v281
    %v330 = vunpack.c.l.b16 %v282
    %v331 = vunpack.c.h.b16 %v282
    %v332 = vunpack.c.l.b16 %v283
    %v333 = vunpack.c.h.b16 %v283
    %v334 = vunpack.c.l.b16 %v284
    %v335 = vunpack.c.h.b16 %v284
    %v336 = vunpack.c.l.b16 %v285
    %v337 = vunpack.c.h.b16 %v285
    %v338 = vunpack.c.l.b16 %v286
    %v339 = vunpack.c.h.b16 %v286
    %v340 = vunpack.c.l.b16 %v287
    %v341 = vunpack.c.h.b16 %v287
    %v342 = vunpack.c.l.b16 %v288
    %v343 = vunpack.c.h.b16 %v288
    %v344 = vunpack.c.l.b16 %v289
    %v345 = vunpack.c.h.b16 %v289
    %v346 = vunpack.c.l.b16 %v290
    %v347 = vunpack.c.h.b16 %v290
    %v348 = vunpack.c.l.b16 %v291
    %v349 = vunpack.c.h.b16 %v291
    %v350 = vunpack.c.l.b16 %v292
    %v351 = vunpack.c.h.b16 %v292
    %v352 = vunpack.c.l.b16 %v293
    %v353 = vunpack.c.h.b16 %v293
    %v354 = vpack.c.b16 %v324, %v322
    %v355 = vpack.c.b16 %v325, %v323
    %v356 = vpack.c.b16 %v328, %v326
    %v357 = vpack.c.b16 %v329, %v327
    %v358 = vpack.c.b16 %v332, %v330
    %v359 = vpack.c.b16 %v333, %v331
    %v360 = vpack.c.b16 %v336, %v334
    %v361 = vpack.c.b16 %v337, %v335
    %v362 = vpack.c.b16 %v340, %v338
    %v363 = vpack.c.b16 %v341, %v339
    %v364 = vpack.c.b16 %v344, %v342
    %v365 = vpack.c.b16 %v345, %v343
    %v366 = vpack.c.b16 %v348, %v346
    %v367 = vpack.c.b16 %v349, %v347
    %v368 = vpack.c.b16 %v352, %v350
    %v369 = vpack.c.b16 %v353, %v351
    %386 = vmatprep.subr.bf16.mxu0 %v369
    %387 = vmatpush1.bf16.msra.mxu0 %v368
    %388 = vmatprep.subr.bf16.mxu0 %v367
    %389 = vmatpush1.bf16.msra.mxu0 %v366
    %390 = vmatprep.subr.bf16.mxu0 %v365
    %391 = vmatpush1.bf16.msra.mxu0 %v364
    %392 = vmatprep.subr.bf16.mxu0 %v363
    %393 = vmatpush1.bf16.msra.mxu0 %v362
    %394 = vmatprep.subr.bf16.mxu0 %v361
    %395 = vmatpush1.bf16.msra.mxu0 %v360
    %396 = vmatprep.subr.bf16.mxu0 %v359
    %397 = vmatpush1.bf16.msra.mxu0 %v358
    %398 = vmatprep.subr.bf16.mxu0 %v357
    %399 = vmatpush1.bf16.msra.mxu0 %v356
    %400 = vmatprep.subr.bf16.mxu0 %v355
    %401 = vmatpush1.bf16.msra.mxu0 %v354
    %402 = vmatprep.subr.bf16.mxu0 0
    %403 = vmatpush2.bf16.msra.mxu0 0
    %404 = vmatprep.subr.bf16.mxu0 0
    %405 = vmatpush2.bf16.msra.mxu0 0
    %406 = vmatprep.subr.bf16.mxu0 0
    %407 = vmatpush2.bf16.msra.mxu0 0
    %408 = vmatprep.subr.bf16.mxu0 0
    %409 = vmatpush2.bf16.msra.mxu0 0
    %410 = vmatprep.subr.bf16.mxu0 0
    %411 = vmatpush2.bf16.msra.mxu0 0
    %412 = vmatprep.subr.bf16.mxu0 0
    %413 = vmatpush2.bf16.msra.mxu0 0
    %414 = vmatprep.subr.bf16.mxu0 0
    %415 = vmatpush2.bf16.msra.mxu0 0
    %416 = vmatprep.subr.bf16.mxu0 0
    %417 = vmatpush2.bf16.msra.mxu0 0
    %418 = vmatprep.mubr.bf16.mxu0 0
    %419 = vmatmul.mubr.bf16.gmra.mxu0 %v277
    %v420 = vpop.f32.mrf.mxu0
    %v421 = vadd.f32 %v299, %v420
    %v422 = vpop.f32.mrf.mxu0
    %v423 = vadd.f32 %v303, %v422
    %v424 = vpop.f32.mrf.mxu0
    %v425 = vadd.f32 %v299, %v424
    %v426 = vpop.f32.mrf.mxu0
    %v427 = vadd.f32 %v303, %v426
    %428 = vdwg.mxu0
    %429 = vst [vmem:[#allocation7] sm:$0xff] %v421
    %430 = vst [vmem:[#allocation7 + $0x8] sm:$0xff] %v425
    %431 = vst [vmem:[#allocation8] sm:$0xff] %v423
    %432 = vst [vmem:[#allocation8 + $0x8] sm:$0xff] %v427
    // Predicated region
    $region22: #{tpu_custom_call.1} parent=1 // pred_check
      _
    $region23: #{tpu_custom_call.1} parent=1 // pred_check_branch
      %434 = sbr.rel (0) target = $region25
    $region24: #{tpu_custom_call.1} parent=1 // pred_region
      %s436 = ssub.s32 256, 256
      %437 = vsyncadd [#allocation4], %s436
      %s438 = sshll.u32 [#allocation7], 4
      %s439 = int_to_ptr.vmem [resolvable:$true] %s438
      %444 = dma.vmem_to_hbm [thread:$0]  %s439, 256, %s3, [#allocation4], 128, 128, 8
    $region25: #{tpu_custom_call.1} parent=1 // pred_fallthru
      _
    // Predicated region
    $region26: #{tpu_custom_call.1} parent=1 // pred_check
      _
    $region27: #{tpu_custom_call.1} parent=1 // pred_check_branch
      %446 = sbr.rel (0) target = $region29
    $region28: #{tpu_custom_call.1} parent=1 // pred_region
      %s448 = ssub.s32 256, 256
      %449 = vsyncadd [#allocation9], %s448
      %s450 = sshll.u32 [#allocation8], 4
      %s451 = int_to_ptr.vmem [resolvable:$true] %s450
      %456 = dma.vmem_to_hbm [thread:$0]  %s451, 256, %s4, [#allocation9], 128, 128, 8
    $region29: #{tpu_custom_call.1} parent=1 // pred_fallthru
      _
    // Predicated region
    $region30: #{tpu_custom_call.1} parent=1 // pred_check
      _
    $region31: #{tpu_custom_call.1} parent=1 // pred_check_branch
      %458 = sbr.rel (0) target = $region33
    $region32: #{tpu_custom_call.1} parent=1 // pred_region
      %459 = dma.done [#allocation4], 256
    $region33: #{tpu_custom_call.1} parent=1 // pred_fallthru
      _
    // Predicated region
    $region34: #{tpu_custom_call.1} parent=1 // pred_check
      _
    $region35: #{tpu_custom_call.1} parent=1 // pred_check_branch
      %461 = sbr.rel (0) target = $region37
    $region36: #{tpu_custom_call.1} parent=1 // pred_region
      %462 = dma.done [#allocation9], 256
    $region37: #{tpu_custom_call.1} parent=1 // pred_fallthru
      _
    %463 = vsyncpa [#allocation3], 1
    %464 = vsyncpa [#allocation6], 1
    %465 = vsyncpa [#allocation4], 1
    %466 = vsyncpa [#allocation9], 1

</llo_original>
